<compile_context>
chip_gen: v7x
topology: tpu7x:2x2x1
jax: 0.10.0
libtpu: 0.0.40
codegen_flags: <defaults>
</compile_context>

<pallas_src>
import jax
import jax.numpy as jnp
from jax.experimental import pallas as pl
from jax.experimental.pallas import tpu as pltpu


def _transition_kernel(x_ref, scale_ref, shift_ref, w_ref, o_ref):
    # x_ref:     (1, TM, K)      K = 4*Cin (2x2 pool window unrolled onto lanes)
    # scale_ref: (1, K)          folded BN scale, tiled 4x
    # shift_ref: (1, K)          folded BN shift, tiled 4x
    # w_ref:     (K, Cout_p)     conv weight tiled 4x along K, * 1/4, cols zero-padded
    # o_ref:     (1, TM, Cout_p)
    y = jnp.maximum(x_ref[0] * scale_ref[...] + shift_ref[...], 0.0)
    o_ref[0] = jnp.dot(
        y.astype(w_ref.dtype), w_ref[...], preferred_element_type=jnp.float32
    ).astype(o_ref.dtype)


def _round_up(x, m):
    return (x + m - 1) // m * m


def _pick_spatial_tile(m, k, cout_p, bytes_per=4, stage_budget=8 << 20):
    """Largest tile of the flattened (H/2)*(W/2) axis that divides m, is a
    multiple of 8 (sublane aligned) and keeps one pipeline stage under budget."""
    cap = max(8, stage_budget // (bytes_per * (k + cout_p)))
    if m <= cap:
        return m
    for t in range(min(cap, m), 7, -1):
        if m % t == 0 and t % 8 == 0:
            return t
    return m  # full extent is always a legal block shape


def transition_forward(x_nchw, gamma, beta, conv_w, eps=1e-5, mxu_dtype=None):
    """x_nchw: (N, Cin, H, W). conv_w: (Cout, Cin, 1, 1). Returns (N, Cout, H//2, W//2)."""
    N, Cin, H, W = x_nchw.shape
    Cout = conv_w.shape[0]
    assert H % 2 == 0 and W % 2 == 0, "avg_pool2d(2) path assumes even H, W"
    H2, W2 = H // 2, W // 2
    K = 4 * Cin
    Cout_p = _round_up(Cout, 128)       # lane-dense output (unmasked stores)
    M = H2 * W2

    x = x_nchw.astype(jnp.float32)

    # --- glue: training-mode BN statistics, single fused pass over x ---
    s1 = jnp.mean(x, axis=(0, 2, 3))                     # E[x]   per channel
    s2 = jnp.mean(x * x, axis=(0, 2, 3))                 # E[x^2] per channel
    var = jnp.maximum(s2 - s1 * s1, 0.0)                 # biased batch variance
    scale = gamma / jnp.sqrt(var + eps)                  # (Cin,)
    shift = beta - s1 * scale                            # (Cin,)

    # --- layout plumbing (one XLA transpose/copy, same traffic as NCHW->NHWC) ---
    # space-to-depth: (N, Cin, H, W) -> (N, H2*W2, [dy, dx, Cin])
    x_s2d = x.reshape(N, Cin, H2, 2, W2, 2)
    x_s2d = jnp.transpose(x_s2d, (0, 2, 4, 3, 5, 1)).reshape(N, M, K)

    scale4 = jnp.tile(scale, 4).reshape(1, K)
    shift4 = jnp.tile(shift, 4).reshape(1, K)
    # 1x1 conv == matmul over channels; the pool's 1/4 is folded into the weight.
    w_t = jnp.transpose(conv_w[:, :, 0, 0], (1, 0))      # (Cin, Cout)
    w4 = jnp.tile(w_t, (4, 1)) * 0.25                    # (K, Cout)
    if mxu_dtype is not None:                            # e.g. jnp.bfloat16 on v6e/v7x
        w4 = w4.astype(mxu_dtype)
    w4 = jnp.pad(w4, ((0, 0), (0, Cout_p - Cout)))       # zero-pad to lane-dense Cout_p

    TM = _pick_spatial_tile(M, K, Cout_p)
    grid = (N, M // TM)

    block_bytes = 4 * TM * (K + Cout_p)                  # one x block + one out block
    vmem_limit = int(min(max(4 * block_bytes + (8 << 20), 16 << 20), 48 << 20))

    out_p = pl.pallas_call(
        _transition_kernel,
        out_shape=jax.ShapeDtypeStruct((N, M, Cout_p), x_nchw.dtype),
        grid_spec=pltpu.PrefetchScalarGridSpec(
            num_scalar_prefetch=0,
            grid=grid,
            in_specs=[
                pl.BlockSpec((1, TM, K), lambda n, m: (n, m, 0)),
                pl.BlockSpec((1, K), lambda n, m: (0, 0)),
                pl.BlockSpec((1, K), lambda n, m: (0, 0)),
                pl.BlockSpec((K, Cout_p), lambda n, m: (0, 0)),
            ],
            out_specs=pl.BlockSpec((1, TM, Cout_p), lambda n, m: (n, m, 0)),
        ),
        compiler_params=pltpu.CompilerParams(
            dimension_semantics=("parallel", "parallel"),
            vmem_limit_bytes=vmem_limit,
        ),
    )(x_s2d, scale4, shift4, w4)

    out = out_p[:, :, :Cout].reshape(N, H2, W2, Cout)    # drop lane padding
    return jnp.transpose(out, (0, 3, 1, 2))              # NHWC -> NCHW


def _reference(x_nchw, gamma, beta, conv_w, eps=1e-5):
    """Pure-JAX reference matching the PyTorch module (training-mode BN)."""
    mean = jnp.mean(x_nchw, axis=(0, 2, 3), keepdims=True)
    var = jnp.mean((x_nchw - mean) ** 2, axis=(0, 2, 3), keepdims=True)
    xn = (x_nchw - mean) / jnp.sqrt(var + eps)
    xn = xn * gamma[None, :, None, None] + beta[None, :, None, None]
    r = jnp.maximum(xn, 0.0)
    out = jnp.einsum("nchw,oc->nohw", r, conv_w[:, :, 0, 0])   # 1x1 conv, no bias
    N, Co, H, W = out.shape
    out = out.reshape(N, Co, H // 2, 2, W // 2, 2).mean(axis=(3, 5))
    return out


if __name__ == "__main__":
    in_planes, out_planes = 4, 8
    N, H, W = 2, 16, 16

    key = jax.random.PRNGKey(0)
    k_x, k_g, k_b, k_w = jax.random.split(key, 4)

    x = jax.random.normal(k_x, (N, in_planes, H, W), dtype=jnp.float32)
    gamma = 1.0 + 0.1 * jax.random.normal(k_g, (in_planes,), dtype=jnp.float32)
    beta = 0.1 * jax.random.normal(k_b, (in_planes,), dtype=jnp.float32)
    conv_w = jax.random.normal(k_w, (out_planes, in_planes, 1, 1), dtype=jnp.float32) * (
        1.0 / jnp.sqrt(in_planes)
    )

    out = transition_forward(x, gamma, beta, conv_w)
    out = jax.block_until_ready(out)

    ref = _reference(x, gamma, beta, conv_w)
    assert out.shape == (N, out_planes, H // 2, W // 2), out.shape
    max_err = float(jnp.max(jnp.abs(out - ref)))
    assert jnp.allclose(out, ref, atol=1e-4, rtol=1e-4), max_err

    print("KERNEL_OK")
</pallas_src>

<mosaic_0001>
module attributes {stable_mosaic.version = 11 : i64} {
  func.func @_transition_kernel(%arg0: i32, %arg1: i32, %arg2: memref<1x64x16xf32, #tpu.memory_space<vmem>>, %arg3: memref<1x16xf32, #tpu.memory_space<vmem>>, %arg4: memref<1x16xf32, #tpu.memory_space<vmem>>, %arg5: memref<16x128xf32, #tpu.memory_space<vmem>>, %arg6: memref<1x64x128xf32, #tpu.memory_space<vmem>>) attributes {dimension_semantics = [#tpu.dimension_semantics<parallel>, #tpu.dimension_semantics<parallel>], iteration_bounds = array<i64: 2, 1>, scalar_prefetch = 0 : i64, scratch_operands = 0 : i64, tpu.core_type = #tpu.core_type<tc>, window_params = [{transform_indices = @transform_0, window_bounds = array<i64: 1, 64, 16>}, {pipeline_mode = #tpu.pipeline_mode<synchronous>, transform_indices = @transform_1, window_bounds = array<i64: 1, 16>}, {pipeline_mode = #tpu.pipeline_mode<synchronous>, transform_indices = @transform_2, window_bounds = array<i64: 1, 16>}, {pipeline_mode = #tpu.pipeline_mode<synchronous>, transform_indices = @transform_3, window_bounds = array<i64: 16, 128>}, {transform_indices = @transform_4, window_bounds = array<i64: 1, 64, 128>}]} {
    %c0 = arith.constant 0 : index
    %c0_0 = arith.constant 0 : index
    %c0_1 = arith.constant 0 : index
    %0 = vector.load %arg2[%c0, %c0_0, %c0_1] : memref<1x64x16xf32, #tpu.memory_space<vmem>>, vector<1x64x16xf32>
    %1 = vector.shape_cast %0 : vector<1x64x16xf32> to vector<64x16xf32>
    %c0_2 = arith.constant 0 : index
    %c0_3 = arith.constant 0 : index
    %2 = vector.load %arg3[%c0_2, %c0_3] : memref<1x16xf32, #tpu.memory_space<vmem>>, vector<1x16xf32>
    %3 = vector.broadcast %2 : vector<1x16xf32> to vector<64x16xf32>
    %4 = arith.mulf %1, %3 : vector<64x16xf32>
    %c0_4 = arith.constant 0 : index
    %c0_5 = arith.constant 0 : index
    %5 = vector.load %arg4[%c0_4, %c0_5] : memref<1x16xf32, #tpu.memory_space<vmem>>, vector<1x16xf32>
    %6 = vector.broadcast %5 : vector<1x16xf32> to vector<64x16xf32>
    %7 = arith.addf %4, %6 : vector<64x16xf32>
    %cst = arith.constant 0.000000e+00 : f32
    %8 = vector.broadcast %cst : f32 to vector<64x16xf32>
    %9 = arith.maximumf %7, %8 : vector<64x16xf32>
    %c0_6 = arith.constant 0 : index
    %c0_7 = arith.constant 0 : index
    %10 = vector.load %arg5[%c0_6, %c0_7] : memref<16x128xf32, #tpu.memory_space<vmem>>, vector<16x128xf32>
    %cst_8 = arith.constant dense<0.000000e+00> : vector<64x128xf32>
    %11 = tpu.matmul %9, %10, %cst_8 {dimension_numbers = #tpu.dot_dimension_numbers<[1], [0], [0], [1], [0, 0, 1, 1], [], []>} : vector<64x16xf32>, vector<16x128xf32>, vector<64x128xf32> -> vector<64x128xf32>
    %c0_9 = arith.constant 0 : index
    %c0_10 = arith.constant 0 : index
    %c0_11 = arith.constant 0 : index
    %12 = vector.load %arg6[%c0_9, %c0_10, %c0_11] : memref<1x64x128xf32, #tpu.memory_space<vmem>>, vector<1x64x128xf32>
    %13 = vector.shape_cast %12 : vector<1x64x128xf32> to vector<64x128xf32>
    %14 = vector.shape_cast %11 : vector<64x128xf32> to vector<1x64x128xf32>
    tpu.vector_store %arg6[%c0_9, %c0_10, %c0_11], %14 {strides = array<i32>} : memref<1x64x128xf32, #tpu.memory_space<vmem>>, vector<1x64x128xf32>,
    return
  }
  func.func @transform_0(%arg0: i32, %arg1: i32) -> (i32, i32, i32) {
    %c0_i32 = arith.constant 0 : i32
    %c0_i32_0 = arith.constant 0 : i32
    return %arg0, %arg1, %c0_i32 : i32, i32, i32
  }
  func.func @transform_1(%arg0: i32, %arg1: i32) -> (i32, i32) {
    %c0_i32 = arith.constant 0 : i32
    %c0_i32_0 = arith.constant 0 : i32
    %c0_i32_1 = arith.constant 0 : i32
    return %c0_i32, %c0_i32_0 : i32, i32
  }
  func.func @transform_2(%arg0: i32, %arg1: i32) -> (i32, i32) {
    %c0_i32 = arith.constant 0 : i32
    %c0_i32_0 = arith.constant 0 : i32
    %c0_i32_1 = arith.constant 0 : i32
    return %c0_i32, %c0_i32_0 : i32, i32
  }
  func.func @transform_3(%arg0: i32, %arg1: i32) -> (i32, i32) {
    %c0_i32 = arith.constant 0 : i32
    %c0_i32_0 = arith.constant 0 : i32
    %c0_i32_1 = arith.constant 0 : i32
    return %c0_i32, %c0_i32_0 : i32, i32
  }
  func.func @transform_4(%arg0: i32, %arg1: i32) -> (i32, i32, i32) {
    %c0_i32 = arith.constant 0 : i32
    %c0_i32_0 = arith.constant 0 : i32
    return %arg0, %arg1, %c0_i32 : i32, i32, i32
  }
}

</mosaic_0001>

<llo_original>
// kernel: tpu_custom_call.1
$region0: #{tpu_custom_call.1}
  #allocation0 [shape = 'u32[]', space=smem, size = 0x4, offset = 0x4, fixed_abs, tag = 'smem constant byte address 0x4 - core index']
  #allocation1 [shape = 'u32[144,128]{1,0:T(1,128)}', space=vmem, size = 0x12000, scoped, tag = 'internal scratch']
  %s0 = inlined_call_operand.vmem [shape: f32[2,64,16], index: 0, kind: input, shape index: {}]
  %s1 = inlined_call_operand.vmem [shape: f32[1,16], index: 1, kind: input, shape index: {}]
  %s2 = inlined_call_operand.vmem [shape: f32[1,16], index: 2, kind: input, shape index: {}]
  %s3 = inlined_call_operand.vmem [shape: f32[16,128], index: 3, kind: input, shape index: {}]
  %s4 = inlined_call_operand.hbm [shape: f32[2,64,128], index: 4, kind: output, shape index: {}]
  %s5 = sld [smem:[#allocation0]]
  $region49: #{tpu_custom_call.1} parent=0
    _
  %s7 = ssub.s32 1, %s5
  %s8 = scalar_select 0, %s7, %s5
  $region1: #{tpu_custom_call.1} parent=0
    #allocation2 [shape = 'u8[65536]{0}', space=vmem, size = 0x10000, scoped, tag = 'output window, operand 0']
    #allocation3 [shape = 's32[2]{0}', space=sflag, size = 0x8, scoped, tag = 'scoped memory for tpu_custom_call.1']
    %9 = vsyncpa [#allocation3], 0
    %s10 = scalar_lea.sflag [#allocation3], 1
    %11 = vsyncpa %s10, 0
    loop: start=0, step=1, limit=4
    $region2: #{tpu_custom_call.1} parent=1 // loop_pre_header
      _
    $region3: #{tpu_custom_call.1} parent=1 // loop_header
      %s13 = sphi 0, %s17
      %p14 = scmp.ge.s32.totalorder %s13, 4
      %s20 = sphi 0, %s32
      %s21 = sphi 0, %s28
      %s22 = sphi 0, %s20
      %s23 = sphi 0, %s21
      %s24 = sphi 0, %s22
      %s25 = sphi 0, %s23
      %s37 = sphi 0, %s39
      %s40 = sphi 0, %s37
      %s41 = sphi 0, %s40
      %s57 = sphi 0, %s41
      %s61 = sphi 0, %s61
      %s63 = sphi 0, %s61
      %s64 = sphi 0, %s63
      %s78 = sphi 0, %s64
      %s82 = sphi 0, %s82
      %s84 = sphi 0, %s82
      %s85 = sphi 0, %s84
      %s99 = sphi 0, %s85
      %s103 = sphi 0, %s103
      %s105 = sphi 0, %s103
      %s106 = sphi 0, %s105
      %s120 = sphi 0, %s106
      %s128 = sphi 0, %s130
      %s131 = sphi 0, %s128
      %s132 = sphi 0, %s131
      %s148 = sphi 0, %s132
    $region4: #{tpu_custom_call.1} parent=1 // loop_header_branch
      %16 = sbr.rel (%p14) target = $region8
    $region5: #{tpu_custom_call.1} parent=1 // loop_body
      %s18 = ssub.s32 %s13, 1
      %s19 = ssub.s32 %s13, 2
      %s26 = sadd.s32 1, %s21
      %p27 = scmp.ge.s32.totalorder %s26, 1
      %s28 = scalar_select %p27, 0, %s26
      %s29 = sadd.s32 1, %s20
      %s30 = scalar_select %p27, %s29, %s20
      %p31 = scmp.ge.s32.totalorder %s30, 2
      %s32 = scalar_select %p31, 0, %s30
      %s33 = ssub.s32 %s20, %s32
      %s34 = ssub.s32 %s21, %s28
      %s35 = sor.u32 %s33, %s34
      %p36 = scmp.eq.s32.totalorder %s35, 0
      %s38 = sadd.s32 %s37, 1
      %s39 = scalar_select %p36, %s37, %s38
      %p42 = pneg %p36
      %p43 = scmp.eq.s32.totalorder %s13, 1
      %p44 = por %p42, %p43
      %p45 = scmp.ne.s32.totalorder %s37, %s40
      %p46 = scmp.eq.s32.totalorder %s13, 0
      %p47 = por %p45, %p46
      %p48 = scmp.ne.s32.totalorder %s37, %s40
      %p49 = scmp.eq.s32.totalorder %s18, 1
      %p50 = por %p48, %p49
      %p51 = scmp.ne.s32.totalorder %s40, %s41
      %p52 = scmp.eq.s32.totalorder %s18, 0
      %p53 = por %p51, %p52
      %p54 = scmp.ne.s32.totalorder %s40, %s41
      %p55 = scmp.eq.s32.totalorder %s19, 1
      %p56 = por %p54, %p55
      %p58 = scmp.ne.s32.totalorder %s41, %s57
      %p59 = scmp.eq.s32.totalorder %s19, 0
      %p60 = por %p58, %p59
      %s62 = sadd.s32 %s61, 1
      %p65 = scmp.eq.s32.totalorder %s13, 1
      %p66 = scmp.ne.s32.totalorder %s61, %s63
      %p67 = scmp.eq.s32.totalorder %s13, 0
      %p68 = por %p66, %p67
      %p69 = scmp.ne.s32.totalorder %s61, %s63
      %p70 = scmp.eq.s32.totalorder %s18, 1
      %p71 = por %p69, %p70
      %p72 = scmp.ne.s32.totalorder %s63, %s64
      %p73 = scmp.eq.s32.totalorder %s18, 0
      %p74 = por %p72, %p73
      %p75 = scmp.ne.s32.totalorder %s63, %s64
      %p76 = scmp.eq.s32.totalorder %s19, 1
      %p77 = por %p75, %p76
      %p79 = scmp.ne.s32.totalorder %s64, %s78
      %p80 = scmp.eq.s32.totalorder %s19, 0
      %p81 = por %p79, %p80
      %s83 = sadd.s32 %s82, 1
      %p86 = scmp.eq.s32.totalorder %s13, 1
      %p87 = scmp.ne.s32.totalorder %s82, %s84
      %p88 = scmp.eq.s32.totalorder %s13, 0
      %p89 = por %p87, %p88
      %p90 = scmp.ne.s32.totalorder %s82, %s84
      %p91 = scmp.eq.s32.totalorder %s18, 1
      %p92 = por %p90, %p91
      %p93 = scmp.ne.s32.totalorder %s84, %s85
      %p94 = scmp.eq.s32.totalorder %s18, 0
      %p95 = por %p93, %p94
      %p96 = scmp.ne.s32.totalorder %s84, %s85
      %p97 = scmp.eq.s32.totalorder %s19, 1
      %p98 = por %p96, %p97
      %p100 = scmp.ne.s32.totalorder %s85, %s99
      %p101 = scmp.eq.s32.totalorder %s19, 0
      %p102 = por %p100, %p101
      %s104 = sadd.s32 %s103, 1
      %p107 = scmp.eq.s32.totalorder %s13, 1
      %p108 = scmp.ne.s32.totalorder %s103, %s105
      %p109 = scmp.eq.s32.totalorder %s13, 0
      %p110 = por %p108, %p109
      %p111 = scmp.ne.s32.totalorder %s103, %s105
      %p112 = scmp.eq.s32.totalorder %s18, 1
      %p113 = por %p111, %p112
      %p114 = scmp.ne.s32.totalorder %s105, %s106
      %p115 = scmp.eq.s32.totalorder %s18, 0
      %p116 = por %p114, %p115
      %p117 = scmp.ne.s32.totalorder %s105, %s106
      %p118 = scmp.eq.s32.totalorder %s19, 1
      %p119 = por %p117, %p118
      %p121 = scmp.ne.s32.totalorder %s106, %s120
      %p122 = scmp.eq.s32.totalorder %s19, 0
      %p123 = por %p121, %p122
      %s124 = ssub.s32 %s20, %s32
      %s125 = ssub.s32 %s21, %s28
      %s126 = sor.u32 %s124, %s125
      %p127 = scmp.eq.s32.totalorder %s126, 0
      %s129 = sadd.s32 %s128, 1
      %s130 = scalar_select %p127, %s128, %s129
      %p133 = pneg %p127
      %p134 = scmp.eq.s32.totalorder %s13, 1
      %p135 = por %p133, %p134
      %p136 = scmp.ne.s32.totalorder %s128, %s131
      %p137 = scmp.eq.s32.totalorder %s13, 0
      %p138 = por %p136, %p137
      %p139 = scmp.ne.s32.totalorder %s128, %s131
      %p140 = scmp.eq.s32.totalorder %s18, 1
      %p141 = por %p139, %p140
      %p142 = scmp.ne.s32.totalorder %s131, %s132
      %p143 = scmp.eq.s32.totalorder %s18, 0
      %p144 = por %p142, %p143
      %p145 = scmp.ne.s32.totalorder %s131, %s132
      %p146 = scmp.eq.s32.totalorder %s19, 1
      %p147 = por %p145, %p146
      %p149 = scmp.ne.s32.totalorder %s132, %s148
      %p150 = scmp.eq.s32.totalorder %s19, 0
      %p151 = por %p149, %p150
      %p152 = scmp.le.s32.totalorder 1, %s13
      %p153 = scmp.lt.s32.totalorder %s13, 3
      %p154 = pnand %p152, %p153
      %p155 = pneg %p154
      // Predicated region
      $region9: #{tpu_custom_call.1} parent=5 // pred_check
        _
      $region10: #{tpu_custom_call.1} parent=5 // pred_check_branch
        %157 = sbr.rel (%p154) target = $region12
      $region11: #{tpu_custom_call.1} parent=5 // pred_region
        %s158 = ssub.s32 %s13, 1
        // Predicated region
        $region13: #{tpu_custom_call.1} parent=11 // pred_check
          %p159 = pneg %p74
        $region14: #{tpu_custom_call.1} parent=11 // pred_check_branch
          %161 = sbr.rel (%p159) target = $region16
        $region15: #{tpu_custom_call.1} parent=11 // pred_region
          _
        $region16: #{tpu_custom_call.1} parent=11 // pred_fallthru
          _
        // Predicated region
        $region17: #{tpu_custom_call.1} parent=11 // pred_check
          %p162 = pneg %p95
        $region18: #{tpu_custom_call.1} parent=11 // pred_check_branch
          %164 = sbr.rel (%p162) target = $region20
        $region19: #{tpu_custom_call.1} parent=11 // pred_region
          _
        $region20: #{tpu_custom_call.1} parent=11 // pred_fallthru
          _
        // Predicated region
        $region21: #{tpu_custom_call.1} parent=11 // pred_check
          %p165 = pneg %p116
        $region22: #{tpu_custom_call.1} parent=11 // pred_check_branch
          %167 = sbr.rel (%p165) target = $region24
        $region23: #{tpu_custom_call.1} parent=11 // pred_region
          _
        $region24: #{tpu_custom_call.1} parent=11 // pred_fallthru
          _
      $region12: #{tpu_custom_call.1} parent=5 // pred_fallthru
        _
      %p168 = scmp.lt.s32.totalorder %s13, 2
      // Predicated region
      $region25: #{tpu_custom_call.1} parent=5 // pred_check
        %p169 = pneg %p168
      $region26: #{tpu_custom_call.1} parent=5 // pred_check_branch
        %171 = sbr.rel (%p169) target = $region28
      $region27: #{tpu_custom_call.1} parent=5 // pred_region
        // Predicated region
        $region29: #{tpu_custom_call.1} parent=27 // pred_check
          %p172 = pneg %p47
        $region30: #{tpu_custom_call.1} parent=27 // pred_check_branch
          %174 = sbr.rel (%p172) target = $region32
        $region31: #{tpu_custom_call.1} parent=27 // pred_region
          %s175 = smul.u32 8, %s21
          %p176 = scmp.lt.s32.totalorder %s20, 1
          %s177 = scalar_select %p176, %s20, 1
          %p178 = scmp.lt.s32.totalorder %s175, 7
          %s179 = scalar_select %p178, %s175, 7
          %s180 = smul.addr %s177, 8
          %s181 = sadd.s32 %s179, %s180
          %s182 = smul.addr %s181, 8
          %s183 = scalar_lea.vmem %s0, %s182
          %s184 = smul.u32 8, %s21
        $region32: #{tpu_custom_call.1} parent=27 // pred_fallthru
          _
      $region28: #{tpu_custom_call.1} parent=5 // pred_fallthru
        _
      %p185 = scmp.le.s32.totalorder 1, %s13
      %p186 = scmp.lt.s32.totalorder %s13, 3
      %p187 = pnand %p185, %p186
      %p188 = pneg %p187
      // Predicated region
      $region33: #{tpu_custom_call.1} parent=5 // pred_check
        _
      $region34: #{tpu_custom_call.1} parent=5 // pred_check_branch
        %190 = sbr.rel (%p187) target = $region36
      $region35: #{tpu_custom_call.1} parent=5 // pred_region
        %s191 = ssub.s32 %s13, 1
        %s192 = smul.u32 8, %s23
        %p193 = scmp.lt.s32.totalorder %s22, 1
        %s194 = scalar_select %p193, %s22, 1
        %p195 = scmp.lt.s32.totalorder %s192, 7
        %s196 = scalar_select %p195, %s192, 7
        %s197 = smul.addr %s194, 8
        %s198 = sadd.s32 %s196, %s197
        %s199 = smul.addr %s198, 8
        %s200 = scalar_lea.vmem %s0, %s199
        %p201 = pneg %p53
        %p202 = pneg %p50
        %p203 = pneg %p74
        %p204 = pneg %p71
        %p205 = pneg %p95
        %p206 = pneg %p92
        %p207 = pneg %p116
        %p208 = pneg %p113
        %p209 = pneg %p144
        %p210 = pneg %p141
        %s211 = sand.u32 %s131, 1
        %s212 = scalar_lea.sflag [#allocation3], %s211
        %s213 = sand.u32 %s131, 1
        %s214 = smul.addr %s213, 64
        %s215 = scalar_lea.vmem [#allocation2], %s214
        %s216 = smul.u32 8, %s23
        %p217 = scmp.lt.s32.totalorder %s22, 1
        %s218 = scalar_select %p217, %s22, 1
        %p219 = scmp.lt.s32.totalorder %s216, 7
        %s220 = scalar_select %p219, %s216, 7
        %s221 = smul.addr %s218, 8
        %s222 = sadd.s32 %s220, %s221
        %s223 = smul.addr %s222, 8
        %s224 = scalar_lea.vmem %s0, %s223
        %s225 = smul.u32 8, %s23
        %s226 = smul.u32 8, %s23
        %v227 = vld [vmem:[%s224] sm:$0xff]
        %v228 = vld [vmem:[%s224 + $0x8] sm:$0xff]
        %v229 = vld [vmem:[%s224 + $0x10] sm:$0xff]
        %v230 = vld [vmem:[%s224 + $0x18] sm:$0xff]
        %v231 = vld [vmem:[%s224 + $0x20] sm:$0xff]
        %v232 = vld [vmem:[%s224 + $0x28] sm:$0xff]
        %v233 = vld [vmem:[%s224 + $0x30] sm:$0xff]
        %v234 = vld [vmem:[%s224 + $0x38] sm:$0xff]
        %v235 = vld [vmem:[%s1] sm:$0x1]
        %v237 = vlaneseq
        %v238 = vshrl.u32 %v237, 7
        %v239 = vsub.s32 0, %v238
        %v240 = vrot.slane %v235, %v239
        %v242 = vmul.f32 %v227, %v240
        %v243 = vmul.f32 %v228, %v240
        %v244 = vmul.f32 %v229, %v240
        %v245 = vmul.f32 %v230, %v240
        %v246 = vmul.f32 %v231, %v240
        %v247 = vmul.f32 %v232, %v240
        %v248 = vmul.f32 %v233, %v240
        %v249 = vmul.f32 %v234, %v240
        %v250 = vld [vmem:[%s2] sm:$0x1]
        %v252 = vlaneseq
        %v253 = vshrl.u32 %v252, 7
        %v254 = vsub.s32 0, %v253
        %v255 = vrot.slane %v250, %v254
        %v257 = vadd.f32 %v242, %v255
        %v258 = vadd.f32 %v243, %v255
        %v259 = vadd.f32 %v244, %v255
        %v260 = vadd.f32 %v245, %v255
        %v261 = vadd.f32 %v246, %v255
        %v262 = vadd.f32 %v247, %v255
        %v263 = vadd.f32 %v248, %v255
        %v264 = vadd.f32 %v249, %v255
        %v265 = vmax.f32 %v257, 0.0
        %v266 = vmax.f32 %v258, 0.0
        %v267 = vmax.f32 %v259, 0.0
        %v268 = vmax.f32 %v260, 0.0
        %v269 = vmax.f32 %v261, 0.0
        %v270 = vmax.f32 %v262, 0.0
        %v271 = vmax.f32 %v263, 0.0
        %v272 = vmax.f32 %v264, 0.0
        %v273 = vld [vmem:[%s3] sm:$0xff]
        %v274 = vld [vmem:[%s3 + $0x8] sm:$0xff]
        %vm275 = vcmask 130048
        %v277 = vsel %vm275, %v265, 0
        %v280 = vsel %vm275, %v266, 0
        %v283 = vsel %vm275, %v267, 0
        %v286 = vsel %vm275, %v268, 0
        %v289 = vsel %vm275, %v269, 0
        %v292 = vsel %vm275, %v270, 0
        %v295 = vsel %vm275, %v271, 0
        %v298 = vsel %vm275, %v272, 0
        %300 = vmatprep.subr.mxu0 0.0
        %301 = vmatpush1.msra.mxu0 %v273
        %302 = vmatprep.subr.mxu0 0.0
        %303 = vmatpush1.msra.mxu0 %v274
        %304 = vmatprep.subr.mxu0 0.0
        %305 = vmatpush1.msra.mxu0 0.0
        %306 = vmatprep.subr.mxu0 0.0
        %307 = vmatpush1.msra.mxu0 0.0
        %308 = vmatprep.subr.mxu0 0.0
        %309 = vmatpush1.msra.mxu0 0.0
        %310 = vmatprep.subr.mxu0 0.0
        %311 = vmatpush1.msra.mxu0 0.0
        %312 = vmatprep.subr.mxu0 0.0
        %313 = vmatpush1.msra.mxu0 0.0
        %314 = vmatprep.subr.mxu0 0.0
        %315 = vmatpush1.msra.mxu0 0.0
        %316 = vmatprep.subr.mxu0 0.0
        %317 = vmatpush1.msra.mxu0 0.0
        %318 = vmatprep.subr.mxu0 0.0
        %319 = vmatpush1.msra.mxu0 0.0
        %320 = vmatprep.subr.mxu0 0.0
        %321 = vmatpush1.msra.mxu0 0.0
        %322 = vmatprep.subr.mxu0 0.0
        %323 = vmatpush1.msra.mxu0 0.0
        %324 = vmatprep.subr.mxu0 0.0
        %325 = vmatpush1.msra.mxu0 0.0
        %326 = vmatprep.subr.mxu0 0.0
        %327 = vmatpush1.msra.mxu0 0.0
        %328 = vmatprep.subr.mxu0 0.0
        %329 = vmatpush1.msra.mxu0 0.0
        %330 = vmatprep.subr.mxu0 0.0
        %331 = vmatpush1.msra.mxu0 0.0
        %332 = vmatprep.subr.mxu0 0.0
        %333 = vmatpush1.msra.mxu0 0.0
        %334 = vmatprep.subr.mxu0 0.0
        %335 = vmatpush1.msra.mxu0 0.0
        %336 = vmatprep.subr.mxu0 0.0
        %337 = vmatpush1.msra.mxu0 0.0
        %338 = vmatprep.subr.mxu0 0.0
        %339 = vmatpush1.msra.mxu0 0.0
        %340 = vmatprep.subr.mxu0 0.0
        %341 = vmatpush1.msra.mxu0 0.0
        %342 = vmatprep.subr.mxu0 0.0
        %343 = vmatpush1.msra.mxu0 0.0
        %344 = vmatprep.subr.mxu0 0.0
        %345 = vmatpush1.msra.mxu0 0.0
        %346 = vmatprep.subr.mxu0 0.0
        %347 = vmatpush1.msra.mxu0 0.0
        %348 = vmatprep.subr.mxu0 0.0
        %349 = vmatpush1.msra.mxu0 0.0
        %350 = vmatprep.subr.mxu0 0.0
        %351 = vmatpush1.msra.mxu0 0.0
        %352 = vmatprep.subr.mxu0 0.0
        %353 = vmatpush1.msra.mxu0 0.0
        %354 = vmatprep.subr.mxu0 0.0
        %355 = vmatpush1.msra.mxu0 0.0
        %356 = vmatprep.subr.mxu0 0.0
        %357 = vmatpush1.msra.mxu0 0.0
        %358 = vmatprep.subr.mxu0 0.0
        %359 = vmatpush1.msra.mxu0 0.0
        %360 = vmatprep.subr.mxu0 0.0
        %361 = vmatpush1.msra.mxu0 0.0
        %362 = vmatprep.subr.mxu0 0.0
        %363 = vmatpush1.msra.mxu0 0.0
        %364 = vmatprep.mubr.f32.mxu0 0.0
        %365 = vmatmul.mubr.f32.gmra.mrb[0].mxu0 %v277
        %v366 = vpop.f32.mrb[0].mxu0
        %v367 = vadd.f32 0.0, %v366
        %v368 = vpop.f32.mrb[0].mxu0
        %369 = vmatprep.mubr.f32.mxu0 0.0
        %370 = vmatmul.mubr.f32.gmra.mrb[0].mxu0 %v280
        %v371 = vpop.f32.mrb[0].mxu0
        %v372 = vadd.f32 0.0, %v371
        %v373 = vpop.f32.mrb[0].mxu0
        %374 = vmatprep.mubr.f32.mxu0 0.0
        %375 = vmatmul.mubr.f32.gmra.mrb[0].mxu0 %v283
        %v376 = vpop.f32.mrb[0].mxu0
        %v377 = vadd.f32 0.0, %v376
        %v378 = vpop.f32.mrb[0].mxu0
        %379 = vmatprep.mubr.f32.mxu0 0.0
        %380 = vmatmul.mubr.f32.gmra.mrb[0].mxu0 %v286
        %v381 = vpop.f32.mrb[0].mxu0
        %v382 = vadd.f32 0.0, %v381
        %v383 = vpop.f32.mrb[0].mxu0
        %384 = vmatprep.mubr.f32.mxu0 0.0
        %385 = vmatmul.mubr.f32.gmra.mrb[0].mxu0 %v289
        %v386 = vpop.f32.mrb[0].mxu0
        %v387 = vadd.f32 0.0, %v386
        %v388 = vpop.f32.mrb[0].mxu0
        %389 = vmatprep.mubr.f32.mxu0 0.0
        %390 = vmatmul.mubr.f32.gmra.mrb[0].mxu0 %v292
        %v391 = vpop.f32.mrb[0].mxu0
        %v392 = vadd.f32 0.0, %v391
        %v393 = vpop.f32.mrb[0].mxu0
        %394 = vmatprep.mubr.f32.mxu0 0.0
        %395 = vmatmul.mubr.f32.gmra.mrb[0].mxu0 %v295
        %v396 = vpop.f32.mrb[0].mxu0
        %v397 = vadd.f32 0.0, %v396
        %v398 = vpop.f32.mrb[0].mxu0
        %399 = vmatprep.mubr.f32.mxu0 0.0
        %400 = vmatmul.mubr.f32.gmra.mrb[0].mxu0 %v298
        %v401 = vpop.f32.mrb[0].mxu0
        %v402 = vadd.f32 0.0, %v401
        %v403 = vpop.f32.mrb[0].mxu0
        %404 = vdwg.mxu0
        %405 = vst [vmem:[%s215] sm:$0xff] %v367
        %406 = vst [vmem:[%s215 + $0x8] sm:$0xff] %v372
        %407 = vst [vmem:[%s215 + $0x10] sm:$0xff] %v377
        %408 = vst [vmem:[%s215 + $0x18] sm:$0xff] %v382
        %409 = vst [vmem:[%s215 + $0x20] sm:$0xff] %v387
        %410 = vst [vmem:[%s215 + $0x28] sm:$0xff] %v392
        %411 = vst [vmem:[%s215 + $0x30] sm:$0xff] %v397
        %412 = vst [vmem:[%s215 + $0x38] sm:$0xff] %v402
        %s413 = sand.u32 %s131, 1
        %s414 = scalar_lea.sflag [#allocation3], %s413
        %s415 = sand.u32 %s131, 1
        %s416 = smul.addr %s415, 64
        %s417 = scalar_lea.vmem [#allocation2], %s416
        // Predicated region
        $region37: #{tpu_custom_call.1} parent=35 // pred_check
          %p418 = pneg %p141
        $region38: #{tpu_custom_call.1} parent=35 // pred_check_branch
          %420 = sbr.rel (%p418) target = $region40
        $region39: #{tpu_custom_call.1} parent=35 // pred_region
          %s421 = smul.u32 8, %s23
          %s423 = ssub.s32 1024, 1024
          %424 = vsyncadd %s414, %s423
          %s425 = smul.addr %s22, 8
          %s426 = sadd.s32 %s421, %s425
          %s427 = smul.addr %s426, 128
          %s428 = scalar_lea.hbm %s4, %s427
          %s429 = sshll.u32 %s417, 4
          %s430 = int_to_ptr.vmem [resolvable:$true] %s429
          %435 = dma.vmem_to_hbm [thread:$0]  %s430, 1024, %s428, %s414, 128, 128, 8
        $region40: #{tpu_custom_call.1} parent=35 // pred_fallthru
          _
      $region36: #{tpu_custom_call.1} parent=5 // pred_fallthru
        _
      %p436 = scmp.le.s32.totalorder 2, %s13
      // Predicated region
      $region41: #{tpu_custom_call.1} parent=5 // pred_check
        %p437 = pneg %p436
      $region42: #{tpu_custom_call.1} parent=5 // pred_check_branch
        %439 = sbr.rel (%p437) target = $region44
      $region43: #{tpu_custom_call.1} parent=5 // pred_region
        %s440 = ssub.s32 %s13, 2
        // Predicated region
        $region45: #{tpu_custom_call.1} parent=43 // pred_check
          %p441 = pneg %p147
        $region46: #{tpu_custom_call.1} parent=43 // pred_check_branch
          %443 = sbr.rel (%p441) target = $region48
        $region47: #{tpu_custom_call.1} parent=43 // pred_region
          %s444 = sand.u32 %s132, 1
          %s445 = scalar_lea.sflag [#allocation3], %s444
          %s446 = sand.u32 %s132, 1
          %s447 = smul.addr %s446, 64
          %s448 = scalar_lea.vmem [#allocation2], %s447
          %449 = dma.done %s445, 1024
        $region48: #{tpu_custom_call.1} parent=43 // pred_fallthru
          _
      $region44: #{tpu_custom_call.1} parent=5 // pred_fallthru
        _
    $region6: #{tpu_custom_call.1} parent=1 // loop_footer
      %s17 = sadd.s32 1, %s13
    $region7: #{tpu_custom_call.1} parent=1 // loop_footer_branch
      %12 = sbr.rel target = $region3
    $region8: #{tpu_custom_call.1} parent=1 // loop_exit
      _
    %450 = vsyncpa [#allocation3], 1
    %s451 = scalar_lea.sflag [#allocation3], 1
    %452 = vsyncpa %s451, 1

</llo_original>
